<compile_context>
chip_gen: v6e
topology: v6e:2x2x1
jax: 0.10.0
libtpu: 0.0.40
codegen_flags: <defaults>
</compile_context>

<pallas_src>
import functools

import jax
import jax.numpy as jnp
from jax.experimental import pallas as pl
from jax.experimental.pallas import tpu as pltpu

_EPS = 1e-6  # F.pairwise_distance default eps


def _round_up(x, m):
    return ((x + m - 1) // m) * m


def _vmem_budgets():
    """(input_tile_budget_bytes, vmem_limit_bytes), generation-aware.

    Default is v7x-safe (64 MiB physical VMEM per TensorCore). On v5e/v6e
    (128 MiB physical VMEM) we allow bigger tiles.
    """
    input_budget = 24 << 20   # 3 inputs x 2 pipeline buffers ~= 24 MiB
    vmem_limit = 48 << 20     # <= v7x's 64 MiB physical; never single-buffers
    try:
        kind = jax.devices()[0].device_kind.lower()
        if any(t in kind for t in ("v5e", "v5 lite", "v5litepod", "v6e", "v6 lite")):
            input_budget = 48 << 20
            vmem_limit = 64 << 20
    except Exception:
        pass
    return input_budget, vmem_limit


def _choose_tile_rows(B, D, itemsize, input_budget_bytes):
    """Pick the batch-tile size TB.

    Constraints / goals:
      * TB must be a multiple of the sublane packing, or equal to B.
      * 3 input streams x 2 pipeline buffers x (TB x D_pad) fits the budget
        (D_pad = ceil(D/128)*128: lane padding is real VMEM footprint).
      * Prefer >= 4 (even) grid steps so the pipeline has work to overlap and
        on v7x both TensorCores get tiles.
    """
    sublane = max(8, 32 // itemsize)            # 8 f32, 16 bf16, 32 int8
    d_pad = _round_up(D, 128)
    per_row = 6 * d_pad * itemsize              # 3 inputs * 2 buffers
    tb_budget = max(sublane,
                    (input_budget_bytes // max(per_row, 1)) // sublane * sublane)

    min_tiles = pl.cdiv(B, tb_budget)           # forced by the VMEM budget
    desired = max(4, min_tiles)
    desired += desired % 2                      # even tile count

    tb = _round_up(pl.cdiv(B, desired), sublane)
    tb = min(tb, tb_budget)
    tb = max(tb, sublane)
    if tb >= B:
        return B                                # tiny problem: one full-extent block
    return tb


def _triplet_partial_kernel(a_ref, p_ref, n_ref, o_ref, *,
                            margin, batch, tile_rows, mask_tail):
    a = a_ref[...].astype(jnp.float32)
    p = p_ref[...].astype(jnp.float32)
    n = n_ref[...].astype(jnp.float32)

    # F.pairwise_distance: ||x - y + eps||_2 along the feature (lane) axis.
    diff_ap = a - p + _EPS
    diff_an = a - n + _EPS
    d_ap = jnp.sqrt(jnp.sum(diff_ap * diff_ap, axis=-1, keepdims=True))  # (TB, 1)
    d_an = jnp.sqrt(jnp.sum(diff_an * diff_an, axis=-1, keepdims=True))  # (TB, 1)
    loss = jnp.maximum(d_ap - d_an + margin, 0.0)                        # (TB, 1)

    if mask_tail:
        # Only compiled in when B % TB != 0. True select (not multiplicative)
        # so NaN/Inf garbage in the grid-padded rows cannot poison the sum.
        i = pl.program_id(0)
        row = jax.lax.broadcasted_iota(jnp.int32, loss.shape, 0) + i * tile_rows
        loss = jnp.where(row < batch, loss, 0.0)

    # Lane-dense partial-sum write: one (1,1,128) unmasked store per tile.
    o_ref[...] = jnp.broadcast_to(jnp.sum(loss), o_ref.shape)


def triplet_loss(a, p, n, margin=0.2, *, tile_rows=None):
    """a, p, n: (B, D) embeddings (f32 or bf16). Returns scalar float32 loss."""
    assert a.shape == p.shape == n.shape and a.ndim == 2
    B, D = a.shape
    itemsize = jnp.dtype(a.dtype).itemsize
    sublane = max(8, 32 // itemsize)

    input_budget, vmem_limit = _vmem_budgets()

    if tile_rows is None:
        tb = _choose_tile_rows(B, D, itemsize, input_budget)
    else:
        tb = int(tile_rows)
        if tb < B:
            tb = _round_up(tb, sublane)   # keep the (8,128) BlockSpec constraint
        tb = min(tb, B)

    num_tiles = pl.cdiv(B, tb)
    mask_tail = (B % tb) != 0

    kernel = functools.partial(
        _triplet_partial_kernel,
        margin=float(margin), batch=B, tile_rows=tb, mask_tail=mask_tail,
    )

    in_spec = pl.BlockSpec((tb, D), lambda i: (i, 0))
    partials = pl.pallas_call(
        kernel,
        out_shape=jax.ShapeDtypeStruct((num_tiles, 1, 128), jnp.float32),
        grid_spec=pltpu.PrefetchScalarGridSpec(
            num_scalar_prefetch=0,
            grid=(num_tiles,),
            in_specs=[in_spec, in_spec, in_spec],
            out_specs=pl.BlockSpec((1, 1, 128), lambda i: (i, 0, 0)),
        ),
        compiler_params=pltpu.CompilerParams(
            dimension_semantics=("parallel",),
            vmem_limit_bytes=vmem_limit,
        ),
    )(a, p, n)

    # Final (tiny) reduction: sum of per-tile partial sums / B.
    return jnp.sum(partials[:, 0, 0]) / B


def _ref_loss(a, p, n, margin):
    af, pf, nf = (x.astype(jnp.float32) for x in (a, p, n))
    d_ap = jnp.sqrt(jnp.sum((af - pf + _EPS) ** 2, axis=-1))
    d_an = jnp.sqrt(jnp.sum((af - nf + _EPS) ** 2, axis=-1))
    return jnp.mean(jnp.maximum(d_ap - d_an + margin, 0.0))


if __name__ == "__main__":
    # Case 1: module-scale tiny example (single full-extent tile).
    ka, kp, kn = jax.random.split(jax.random.PRNGKey(0), 3)
    B, D = 8, 32
    a = jax.random.normal(ka, (B, D), dtype=jnp.float32)
    p = jax.random.normal(kp, (B, D), dtype=jnp.float32)
    n = jax.random.normal(kn, (B, D), dtype=jnp.float32)

    loss = triplet_loss(a, p, n, margin=0.2)
    jax.block_until_ready(loss)
    ref = _ref_loss(a, p, n, 0.2)
    assert jnp.allclose(loss, ref, rtol=1e-5, atol=1e-5), (loss, ref)

    # Case 2: user tile size with a ragged last tile (exercises masking + grid).
    k2a, k2p, k2n = jax.random.split(jax.random.PRNGKey(1), 3)
    B2, D2 = 200, 64
    a2 = jax.random.normal(k2a, (B2, D2), dtype=jnp.float32)
    p2 = jax.random.normal(k2p, (B2, D2), dtype=jnp.float32)
    n2 = jax.random.normal(k2n, (B2, D2), dtype=jnp.float32)

    loss2 = triplet_loss(a2, p2, n2, margin=0.2, tile_rows=64)  # 4 tiles, last masked
    jax.block_until_ready(loss2)
    ref2 = _ref_loss(a2, p2, n2, 0.2)
    assert jnp.allclose(loss2, ref2, rtol=1e-5, atol=1e-5), (loss2, ref2)

    # Case 3: auto tile sizing (splits into >= 4 even tiles, exact division).
    k3a, k3p, k3n = jax.random.split(jax.random.PRNGKey(2), 3)
    B3, D3 = 256, 128
    a3 = jax.random.normal(k3a, (B3, D3), dtype=jnp.float32)
    p3 = jax.random.normal(k3p, (B3, D3), dtype=jnp.float32)
    n3 = jax.random.normal(k3n, (B3, D3), dtype=jnp.float32)

    loss3 = triplet_loss(a3, p3, n3, margin=0.2)
    jax.block_until_ready(loss3)
    ref3 = _ref_loss(a3, p3, n3, 0.2)
    assert jnp.allclose(loss3, ref3, rtol=1e-5, atol=1e-5), (loss3, ref3)

    # Case 4: bf16 inputs (halves HBM traffic; in-kernel f32 upcast keeps math sane).
    a4, p4, n4 = (x.astype(jnp.bfloat16) for x in (a3, p3, n3))
    loss4 = triplet_loss(a4, p4, n4, margin=0.2)
    jax.block_until_ready(loss4)
    ref4 = _ref_loss(a4, p4, n4, 0.2)
    assert jnp.allclose(loss4, ref4, rtol=2e-2, atol=2e-2), (loss4, ref4)

    print("KERNEL_OK")
</pallas_src>

<mosaic_0001>
module attributes {stable_mosaic.version = 11 : i64} {
  func.func @_triplet_partial_kernel(%arg0: i32, %arg1: memref<8x32xf32, #tpu.memory_space<vmem>>, %arg2: memref<8x32xf32, #tpu.memory_space<vmem>>, %arg3: memref<8x32xf32, #tpu.memory_space<vmem>>, %arg4: memref<1x1x128xf32, #tpu.memory_space<vmem>>) attributes {dimension_semantics = [#tpu.dimension_semantics<parallel>], iteration_bounds = array<i64: 1>, scalar_prefetch = 0 : i64, scratch_operands = 0 : i64, tpu.core_type = #tpu.core_type<tc>, window_params = [{transform_indices = @transform_0, window_bounds = array<i64: 8, 32>}, {transform_indices = @transform_1, window_bounds = array<i64: 8, 32>}, {transform_indices = @transform_2, window_bounds = array<i64: 8, 32>}, {transform_indices = @transform_3, window_bounds = array<i64: 1, 1, 128>}]} {
    %c0 = arith.constant 0 : index
    %c0_0 = arith.constant 0 : index
    %0 = vector.load %arg1[%c0, %c0_0] : memref<8x32xf32, #tpu.memory_space<vmem>>, vector<8x32xf32>
    %c0_1 = arith.constant 0 : index
    %c0_2 = arith.constant 0 : index
    %1 = vector.load %arg2[%c0_1, %c0_2] : memref<8x32xf32, #tpu.memory_space<vmem>>, vector<8x32xf32>
    %c0_3 = arith.constant 0 : index
    %c0_4 = arith.constant 0 : index
    %2 = vector.load %arg3[%c0_3, %c0_4] : memref<8x32xf32, #tpu.memory_space<vmem>>, vector<8x32xf32>
    %3 = arith.subf %0, %1 : vector<8x32xf32>
    %cst = arith.constant 9.99999997E-7 : f32
    %4 = vector.broadcast %cst : f32 to vector<8x32xf32>
    %5 = arith.addf %3, %4 : vector<8x32xf32>
    %6 = arith.subf %0, %2 : vector<8x32xf32>
    %cst_5 = arith.constant 9.99999997E-7 : f32
    %7 = vector.broadcast %cst_5 : f32 to vector<8x32xf32>
    %8 = arith.addf %6, %7 : vector<8x32xf32>
    %9 = arith.mulf %5, %5 : vector<8x32xf32>
    %cst_6 = arith.constant dense<0.000000e+00> : vector<8xf32>
    %10 = vector.multi_reduction <add>, %9, %cst_6 [1] : vector<8x32xf32> to vector<8xf32>
    %11 = vector.shape_cast %10 : vector<8xf32> to vector<8x1xf32>
    %12 = math.sqrt %11 : vector<8x1xf32>
    %13 = arith.mulf %8, %8 : vector<8x32xf32>
    %cst_7 = arith.constant dense<0.000000e+00> : vector<8xf32>
    %14 = vector.multi_reduction <add>, %13, %cst_7 [1] : vector<8x32xf32> to vector<8xf32>
    %15 = vector.shape_cast %14 : vector<8xf32> to vector<8x1xf32>
    %16 = math.sqrt %15 : vector<8x1xf32>
    %17 = arith.subf %12, %16 : vector<8x1xf32>
    %cst_8 = arith.constant 2.000000e-01 : f32
    %18 = vector.broadcast %cst_8 : f32 to vector<8x1xf32>
    %19 = arith.addf %17, %18 : vector<8x1xf32>
    %cst_9 = arith.constant 0.000000e+00 : f32
    %20 = vector.broadcast %cst_9 : f32 to vector<8x1xf32>
    %21 = arith.maximumf %19, %20 : vector<8x1xf32>
    %22 = vector.shape_cast %21 : vector<8x1xf32> to vector<1x8x1xf32>
    %cst_10 = arith.constant dense<0.000000e+00> : vector<1xf32>
    %23 = vector.multi_reduction <add>, %22, %cst_10 [1, 2] : vector<1x8x1xf32> to vector<1xf32>
    %24 = vector.shape_cast %23 : vector<1xf32> to vector<1x1x1xf32>
    %25 = vector.extract %24[0, 0, 0] : f32 from vector<1x1x1xf32>
    %26 = vector.broadcast %25 : f32 to vector<1x1x128xf32>
    %c0_11 = arith.constant 0 : index
    %c0_12 = arith.constant 0 : index
    %c0_13 = arith.constant 0 : index
    %27 = vector.load %arg4[%c0_11, %c0_12, %c0_13] : memref<1x1x128xf32, #tpu.memory_space<vmem>>, vector<1x1x128xf32>
    tpu.vector_store %arg4[%c0_11, %c0_12, %c0_13], %26 {strides = array<i32>} : memref<1x1x128xf32, #tpu.memory_space<vmem>>, vector<1x1x128xf32>,
    return
  }
  func.func @transform_0(%arg0: i32) -> (i32, i32) {
    %c0_i32 = arith.constant 0 : i32
    %c0_i32_0 = arith.constant 0 : i32
    return %arg0, %c0_i32 : i32, i32
  }
  func.func @transform_1(%arg0: i32) -> (i32, i32) {
    %c0_i32 = arith.constant 0 : i32
    %c0_i32_0 = arith.constant 0 : i32
    return %arg0, %c0_i32 : i32, i32
  }
  func.func @transform_2(%arg0: i32) -> (i32, i32) {
    %c0_i32 = arith.constant 0 : i32
    %c0_i32_0 = arith.constant 0 : i32
    return %arg0, %c0_i32 : i32, i32
  }
  func.func @transform_3(%arg0: i32) -> (i32, i32, i32) {
    %c0_i32 = arith.constant 0 : i32
    %c0_i32_0 = arith.constant 0 : i32
    %c0_i32_1 = arith.constant 0 : i32
    return %arg0, %c0_i32, %c0_i32_0 : i32, i32, i32
  }
}

</mosaic_0001>

<llo_original>
// kernel: tpu_custom_call.1
$region0: #{tpu_custom_call.1}
  #allocation0 [shape = 'u32[]', space=smem, size = 0x4, offset = 0x4, fixed_abs, tag = 'smem constant byte address 0x4 - core index']
  #allocation1 [shape = 'u32[144,128]{1,0:T(1,128)}', space=vmem, size = 0x12000, scoped, tag = 'internal scratch']
  %s0 = inlined_call_operand.hbm [shape: f32[8,32], index: 0, kind: input, shape index: {}]
  %s1 = inlined_call_operand.hbm [shape: f32[8,32], index: 1, kind: input, shape index: {}]
  %s2 = inlined_call_operand.hbm [shape: f32[8,32], index: 2, kind: input, shape index: {}]
  %s3 = inlined_call_operand.hbm [shape: f32[1,1,128], index: 3, kind: output, shape index: {}]
  %s4 = sld [smem:[#allocation0]]
  $region34: #{tpu_custom_call.1} parent=0
    _
  %s6 = ssub.s32 1, %s4
  %s7 = scalar_select 0, %s6, %s4
  $region1: #{tpu_custom_call.1} parent=0
    #allocation2 [shape = 'u8[4096]{0}', space=vmem, size = 0x1000, scoped, tag = 'input window, operand 0, single buffered']
    #allocation3 [shape = 's32[1]{0}', space=sflag, size = 0x4, scoped, tag = 'scoped memory for tpu_custom_call.1']
    #allocation4 [shape = 's32[1]{0}', space=sflag, size = 0x4, scoped, tag = 'scoped memory for tpu_custom_call.1']
    #allocation5 [shape = 'u8[4096]{0}', space=vmem, size = 0x1000, scoped, tag = 'input window, operand 1, single buffered']
    #allocation6 [shape = 's32[1]{0}', space=sflag, size = 0x4, scoped, tag = 'scoped memory for tpu_custom_call.1']
    #allocation7 [shape = 'u8[4096]{0}', space=vmem, size = 0x1000, scoped, tag = 'input window, operand 2, single buffered']
    #allocation8 [shape = 'u8[512]{0}', space=vmem, size = 0x400, scoped, tag = 'output window, operand 0, single buffered']
    %8 = vsyncpa [#allocation3], 0
    %9 = vsyncpa [#allocation6], 0
    %10 = vsyncpa [#allocation4], 0
    // Predicated region
    $region2: #{tpu_custom_call.1} parent=1 // pred_check
      _
    $region3: #{tpu_custom_call.1} parent=1 // pred_check_branch
      %12 = sbr.rel (0) target = $region5
    $region4: #{tpu_custom_call.1} parent=1 // pred_region
      %s14 = ssub.s32 128, 128
      %15 = vsyncadd [#allocation3], %s14
      %s17 = sshll.u32 [#allocation2], 4
      %s18 = int_to_ptr.vmem [resolvable:$true] %s17
      %20 = dma.hbm_to_vmem [thread:$0]  %s0, 128, %s18, [#allocation3]
    $region5: #{tpu_custom_call.1} parent=1 // pred_fallthru
      _
    // Predicated region
    $region6: #{tpu_custom_call.1} parent=1 // pred_check
      _
    $region7: #{tpu_custom_call.1} parent=1 // pred_check_branch
      %22 = sbr.rel (0) target = $region9
    $region8: #{tpu_custom_call.1} parent=1 // pred_region
      %s24 = ssub.s32 128, 128
      %25 = vsyncadd [#allocation6], %s24
      %s27 = sshll.u32 [#allocation5], 4
      %s28 = int_to_ptr.vmem [resolvable:$true] %s27
      %30 = dma.hbm_to_vmem [thread:$0]  %s1, 128, %s28, [#allocation6]
    $region9: #{tpu_custom_call.1} parent=1 // pred_fallthru
      _
    // Predicated region
    $region10: #{tpu_custom_call.1} parent=1 // pred_check
      _
    $region11: #{tpu_custom_call.1} parent=1 // pred_check_branch
      %32 = sbr.rel (0) target = $region13
    $region12: #{tpu_custom_call.1} parent=1 // pred_region
      %s34 = ssub.s32 128, 128
      %35 = vsyncadd [#allocation6], %s34
      %s37 = sshll.u32 [#allocation7], 4
      %s38 = int_to_ptr.vmem [resolvable:$true] %s37
      %40 = dma.hbm_to_vmem [thread:$0]  %s2, 128, %s38, [#allocation6]
    $region13: #{tpu_custom_call.1} parent=1 // pred_fallthru
      _
    // Predicated region
    $region14: #{tpu_custom_call.1} parent=1 // pred_check
      _
    $region15: #{tpu_custom_call.1} parent=1 // pred_check_branch
      %42 = sbr.rel (0) target = $region17
    $region16: #{tpu_custom_call.1} parent=1 // pred_region
      %43 = dma.done [#allocation3], 128
    $region17: #{tpu_custom_call.1} parent=1 // pred_fallthru
      _
    // Predicated region
    $region18: #{tpu_custom_call.1} parent=1 // pred_check
      _
    $region19: #{tpu_custom_call.1} parent=1 // pred_check_branch
      %45 = sbr.rel (0) target = $region21
    $region20: #{tpu_custom_call.1} parent=1 // pred_region
      %46 = dma.done [#allocation6], 128
    $region21: #{tpu_custom_call.1} parent=1 // pred_fallthru
      _
    // Predicated region
    $region22: #{tpu_custom_call.1} parent=1 // pred_check
      _
    $region23: #{tpu_custom_call.1} parent=1 // pred_check_branch
      %48 = sbr.rel (0) target = $region25
    $region24: #{tpu_custom_call.1} parent=1 // pred_region
      %49 = dma.done [#allocation6], 128
    $region25: #{tpu_custom_call.1} parent=1 // pred_fallthru
      _
    %v50 = vld [vmem:[#allocation2] sm:$0xff]
    %v51 = vld [vmem:[#allocation5] sm:$0xff]
    %v52 = vld [vmem:[#allocation7] sm:$0xff]
    %v53 = vsub.f32 %v50, %v51
    %v54 = vadd.f32 %v53, 1e-06
    %v55 = vsub.f32 %v50, %v52
    %v56 = vadd.f32 %v55, 1e-06
    %v57 = vmul.f32 %v54, %v54
    %vm58 = vcmask 261120
    %v59 = vsel %vm58, %v57, 0.0
    %60 = vadd.xlane.f32.xlu0 %v59
    %v61 = vpop.xlane.xlu0 %60
    %v62 = vrsqrt.pop %v61
    %v63 = vmul.f32 %v61, %v62
    %vm64 = vcmp.eq.f32.partialorder %v61, inf
    %v65 = vsel %vm64, %v61, %v63
    %vm66 = vcmp.eq.f32.partialorder %v61, 0.0
    %v67 = vand.u32 %v61, 2147483648
    %v68 = vsel %vm66, %v67, %v65
    %v69 = vmul.f32 %v56, %v56
    %v70 = vsel %vm58, %v69, 0.0
    %71 = vadd.xlane.f32.xlu0 %v70
    %v72 = vpop.xlane.xlu0 %71
    %v73 = vrsqrt.pop %v72
    %v74 = vmul.f32 %v72, %v73
    %vm75 = vcmp.eq.f32.partialorder %v72, inf
    %v76 = vsel %vm75, %v72, %v74
    %vm77 = vcmp.eq.f32.partialorder %v72, 0.0
    %v78 = vand.u32 %v72, 2147483648
    %v79 = vsel %vm77, %v78, %v76
    %v80 = vsub.f32 %v68, %v79
    %v81 = vadd.f32 %v80, 0.2
    %v82 = vmax.f32 %v81, 0.0
    %vm83 = vcmask 7168
    %v84 = vsel %vm83, %v82, 0.0
    %85 = vadd.xlane.f32.xlu0 %v84
    %v86 = vpop.xlane.xlu0 %85
    %v87 = vrot.slane %v86, 4
    %v88 = vadd.f32 %v86, %v87
    %v89 = vrot.slane %v88, 2
    %v90 = vadd.f32 %v88, %v89
    %v91 = vrot.slane %v90, 1
    %v92 = vadd.f32 %v90, %v91
    %s93 = vtos %v92
    %v94 = vstv %s93
    %95 = vst [vmem:[#allocation8] sm:$0x1] %v94
    // Predicated region
    $region26: #{tpu_custom_call.1} parent=1 // pred_check
      _
    $region27: #{tpu_custom_call.1} parent=1 // pred_check_branch
      %97 = sbr.rel (0) target = $region29
    $region28: #{tpu_custom_call.1} parent=1 // pred_region
      %s99 = ssub.s32 16, 16
      %100 = vsyncadd [#allocation4], %s99
      %s102 = sshll.u32 [#allocation8], 4
      %s103 = int_to_ptr.vmem [resolvable:$true] %s102
      %105 = dma.vmem_to_hbm [thread:$0]  %s103, 16, %s3, [#allocation4]
    $region29: #{tpu_custom_call.1} parent=1 // pred_fallthru
      _
    // Predicated region
    $region30: #{tpu_custom_call.1} parent=1 // pred_check
      _
    $region31: #{tpu_custom_call.1} parent=1 // pred_check_branch
      %107 = sbr.rel (0) target = $region33
    $region32: #{tpu_custom_call.1} parent=1 // pred_region
      %108 = dma.done [#allocation4], 16
    $region33: #{tpu_custom_call.1} parent=1 // pred_fallthru
      _
    %109 = vsyncpa [#allocation3], 1
    %110 = vsyncpa [#allocation6], 1
    %111 = vsyncpa [#allocation4], 1

</llo_original>
